<compile_context>
chip_gen: v7x
topology: tpu7x:2x2x1
jax: 0.10.0
libtpu: 0.0.40
codegen_flags: <defaults>
</compile_context>

<pallas_src>
import functools

import jax
import jax.numpy as jnp
from jax.experimental import pallas as pl
from jax.experimental.pallas import tpu as pltpu


def _w2v_loss_kernel(a_ref, b_ref, c_ref, loss_ref, a_out_ref, *, batch):
    """One batch tile of the word2vec negative-sampling loss.

    a_ref     : (TB, 1, E)  center-word embeddings (layer_1 rows)
    b_ref     : (TB, W, E)  context embeddings (layer_2 rows)
    c_ref     : (TB, N, E)  negative-sample embeddings (layer_2 rows)
    loss_ref  : (1, 1, 1)   per-block partial loss (summed in the wrapper)
    a_out_ref : (TB, 1, E)  renormalized center embeddings (max_norm=1)
    """
    TB = a_ref.shape[0]
    blk = pl.program_id(0)

    # torch.nn.Embedding(max_norm=1, norm_type=2): looked-up rows are rescaled so
    # their L2 norm is <= 1 (eps matches PyTorch's renorm eps).
    a = a_ref[...].astype(jnp.float32)                          # (TB, 1, E)
    norm = jnp.sqrt(jnp.sum(a * a, axis=-1, keepdims=True))     # (TB, 1, 1)
    a = a * jnp.where(norm > 1.0, 1.0 / (norm + 1e-7), 1.0)
    a_out_ref[...] = a.astype(a_out_ref.dtype)

    # sim = bmm(embed_{b,c}, embed_a^T): output width is 1, so the MXU would be
    # almost idle -- do it on the VPU with a lane (XLU) reduce instead.
    b = b_ref[...].astype(jnp.float32)                          # (TB, W, E)
    c = c_ref[...].astype(jnp.float32)                          # (TB, N, E)
    sim_b = jnp.sum(b * a, axis=-1)                             # (TB, W)
    sim_c = jnp.sum(c * a, axis=-1)                             # (TB, N)

    def logsig(x):
        # Numerically stable log(sigmoid(x)) (no exp overflow -> log(0) = -inf).
        return jnp.minimum(x, 0.0) - jnp.log(1.0 + jnp.exp(-jnp.abs(x)))

    ls_b = logsig(sim_b + 0.01)       # positives: log(sigmoid(+sim + 0.01))
    ls_c = logsig(-sim_c + 0.01)      # negatives: log(sigmoid(-sim + 0.01))

    # Mask rows that are batch padding (B rounded up to a multiple of TB).
    row_b = blk * TB + jax.lax.broadcasted_iota(jnp.int32, ls_b.shape, 0)
    row_c = blk * TB + jax.lax.broadcasted_iota(jnp.int32, ls_c.shape, 0)
    ls_b = jnp.where(row_b < batch, ls_b, 0.0)
    ls_c = jnp.where(row_c < batch, ls_c, 0.0)

    loss_ref[...] = (-(jnp.sum(ls_b) + jnp.sum(ls_c))).reshape(1, 1, 1)


def _renorm_rows(x, max_norm=1.0):
    norm = jnp.sqrt(jnp.sum(x * x, axis=-1, keepdims=True))
    return x * jnp.where(norm > max_norm, max_norm / (norm + 1e-7), 1.0)


def _pick_block_batch(block_batch, B, W, N, E):
    """Size the batch tile so double-buffered VMEM stays well under the scoped limit."""
    e_pad = -(-E // 128) * 128                       # lane padding
    w_pad = max(8, -(-W // 8) * 8)                   # sublane padding
    n_pad = max(8, -(-N // 8) * 8)
    # Per batch element (f32): a_in + a_out (each padded to 8 sublanes) + b + c.
    per_elem = 4 * e_pad * (2 * 8 + w_pad + n_pad)
    budget = 12 * 1024 * 1024                        # per buffer; x2 for double buffering
    return max(1, min(block_batch, B, budget // per_elem))


def word2vec_bow_forward(params, word, nbor, negs,
                         only_embedding=False, context_is_word=True,
                         block_batch=512):
    """Mirrors Word2VecBow.forward. Returns (loss, embed_a, embed_b, embed_c)."""
    if context_is_word:
        w1, w2 = params["embed"], params["embed2"]
    else:
        w1, w2 = params["tag"], params["tag2"]

    if only_embedding:
        # Pure gather path -- no hot compute, keep it in plain JAX glue.
        a = _renorm_rows(jnp.take(w1, word, axis=0))
        b = _renorm_rows(jnp.take(w1, nbor, axis=0))
        c = _renorm_rows(jnp.take(w1, negs, axis=0))
        return jnp.float32(0.0), jnp.squeeze(a), jnp.squeeze(b), jnp.squeeze(c)

    B = word.shape[0]
    E = w1.shape[1]
    W = nbor.shape[1]
    N = negs.shape[1]

    # Embedding gathers = table lookups, done in plain JAX (embed_b / embed_c must be
    # returned materialized anyway, so the kernel simply streams them once from HBM;
    # no concat copy is made).
    embed_a = jnp.take(w1, word, axis=0).reshape(B, 1, E)       # (B, 1, E)
    embed_b = jnp.take(w2, nbor, axis=0)                        # (B, W, E)
    embed_c = jnp.take(w2, negs, axis=0)                        # (B, N, E)

    TB = _pick_block_batch(block_batch, B, W, N, E)
    G = pl.cdiv(B, TB)
    B_pad = G * TB
    if B_pad != B:
        pad = ((0, B_pad - B), (0, 0), (0, 0))
        a_in = jnp.pad(embed_a, pad)
        b_in = jnp.pad(embed_b, pad)
        c_in = jnp.pad(embed_c, pad)
    else:
        a_in, b_in, c_in = embed_a, embed_b, embed_c

    kernel = functools.partial(_w2v_loss_kernel, batch=B)

    partial_loss, a_out = pl.pallas_call(
        kernel,
        out_shape=(jax.ShapeDtypeStruct((G, 1, 1), jnp.float32),
                   jax.ShapeDtypeStruct((B_pad, 1, E), embed_a.dtype)),
        grid=(G,),
        in_specs=[pl.BlockSpec((TB, 1, E), lambda g: (g, 0, 0)),
                  pl.BlockSpec((TB, W, E), lambda g: (g, 0, 0)),
                  pl.BlockSpec((TB, N, E), lambda g: (g, 0, 0))],
        out_specs=(pl.BlockSpec((1, 1, 1), lambda g: (g, 0, 0)),   # per-block loss
                   pl.BlockSpec((TB, 1, E), lambda g: (g, 0, 0))),
        compiler_params=pltpu.CompilerParams(
            # Each block writes distinct output tiles -> safe to shard the batch axis
            # across the two TensorCores on v7x (no-op on single-TC v5e/v6e).
            dimension_semantics=("parallel",),
            vmem_limit_bytes=32 * 1024 * 1024),
    )(a_in, b_in, c_in)

    loss = jnp.sum(partial_loss)
    return loss, a_out[:B].reshape(B, E), embed_b, embed_c


def _log_sigmoid(x):
    return jnp.minimum(x, 0.0) - jnp.log1p(jnp.exp(-jnp.abs(x)))


def _ref_forward(w1, w2, word, nbor, negs):
    """Pure-JAX reference of the same forward (for correctness check)."""
    a = _renorm_rows(jnp.take(w1, word, axis=0))
    b = jnp.take(w2, nbor, axis=0)
    c = jnp.take(w2, negs, axis=0)
    sim_1 = jnp.einsum("bwe,be->bw", b, a)
    sim_2 = jnp.einsum("bne,be->bn", c, a)
    logsigs_b = _log_sigmoid(sim_1 + 0.01)
    logsigs_c = _log_sigmoid(-sim_2 + 0.01)
    return -(logsigs_b.sum() + logsigs_c.sum()), a, b, c


if __name__ == "__main__":
    vocab_size, embed_size, tag_size = 64, 32, 45

    key = jax.random.PRNGKey(0)
    ks = jax.random.split(key, 8)

    params = {
        # module init: uniform(-embed_size/2, embed_size/2)
        "embed": jax.random.uniform(ks[0], (vocab_size, embed_size), jnp.float32,
                                    -embed_size / 2, embed_size / 2),
        # module init is uniform(-0, 0) == zeros; use small deterministic values
        # instead so the matvec/log-sigmoid/reduction path is exercised non-trivially.
        "embed2": 0.1 * jax.random.normal(ks[1], (vocab_size, embed_size), jnp.float32),
        "tag": jax.random.uniform(ks[2], (vocab_size, tag_size), jnp.float32,
                                  -tag_size / 2, tag_size / 2),
        "tag2": 0.1 * jax.random.normal(ks[3], (vocab_size, tag_size), jnp.float32),
    }

    def run_case(case_key, B, W, N, block_batch):
        kw, kn, kg = jax.random.split(case_key, 3)
        word = jax.random.randint(kw, (B,), 0, vocab_size)
        nbor = jax.random.randint(kn, (B, W), 0, vocab_size)
        negs = jax.random.randint(kg, (B, N), 0, vocab_size)

        loss, ea, eb, ec = word2vec_bow_forward(params, word, nbor, negs,
                                                block_batch=block_batch)
        jax.block_until_ready((loss, ea, eb, ec))

        rl, ra, rb, rc = _ref_forward(params["embed"], params["embed2"],
                                      word, nbor, negs)
        assert jnp.allclose(loss, rl, rtol=1e-3, atol=1e-3), (loss, rl)
        assert jnp.allclose(ea, ra, rtol=1e-5, atol=1e-5)
        assert jnp.allclose(eb, rb) and jnp.allclose(ec, rc)

    # Small case: single block, no padding.
    run_case(ks[5], B=2, W=8, N=8, block_batch=512)
    # Larger case: multi-block grid (G=3) with batch padding + in-kernel masking.
    run_case(ks[6], B=300, W=8, N=8, block_batch=128)
    # Ragged context/negative widths (block second-minor dims equal the full dims).
    run_case(ks[7], B=64, W=5, N=11, block_batch=512)

    print("KERNEL_OK")
</pallas_src>

<mosaic_0001>
module attributes {stable_mosaic.version = 11 : i64} {
  func.func @_w2v_loss_kernel(%arg0: i32, %arg1: memref<2x1x32xf32, #tpu.memory_space<vmem>>, %arg2: memref<2x8x32xf32, #tpu.memory_space<vmem>>, %arg3: memref<2x8x32xf32, #tpu.memory_space<vmem>>, %arg4: memref<1x1x1xf32, #tpu.memory_space<vmem>>, %arg5: memref<2x1x32xf32, #tpu.memory_space<vmem>>) attributes {dimension_semantics = [#tpu.dimension_semantics<parallel>], iteration_bounds = array<i64: 1>, scalar_prefetch = 0 : i64, scratch_operands = 0 : i64, tpu.core_type = #tpu.core_type<tc>, window_params = [{transform_indices = @transform_0, window_bounds = array<i64: 2, 1, 32>}, {transform_indices = @transform_1, window_bounds = array<i64: 2, 8, 32>}, {transform_indices = @transform_2, window_bounds = array<i64: 2, 8, 32>}, {transform_indices = @transform_3, window_bounds = array<i64: 1, 1, 1>}, {transform_indices = @transform_4, window_bounds = array<i64: 2, 1, 32>}]} {
    %c0 = arith.constant 0 : index
    %c0_0 = arith.constant 0 : index
    %c0_1 = arith.constant 0 : index
    %0 = vector.load %arg1[%c0, %c0_0, %c0_1] : memref<2x1x32xf32, #tpu.memory_space<vmem>>, vector<2x1x32xf32>
    %1 = arith.mulf %0, %0 : vector<2x1x32xf32>
    %cst = arith.constant dense<0.000000e+00> : vector<2x1xf32>
    %2 = vector.multi_reduction <add>, %1, %cst [2] : vector<2x1x32xf32> to vector<2x1xf32>
    %3 = vector.shape_cast %2 : vector<2x1xf32> to vector<2x1x1xf32>
    %4 = math.sqrt %3 : vector<2x1x1xf32>
    %cst_2 = arith.constant 1.000000e+00 : f32
    %5 = vector.broadcast %cst_2 : f32 to vector<2x1x1xf32>
    %6 = arith.cmpf ogt, %4, %5 : vector<2x1x1xf32>
    %cst_3 = arith.constant 1.000000e-07 : f32
    %7 = vector.broadcast %cst_3 : f32 to vector<2x1x1xf32>
    %8 = arith.addf %4, %7 : vector<2x1x1xf32>
    %cst_4 = arith.constant 1.000000e+00 : f32
    %9 = vector.broadcast %cst_4 : f32 to vector<2x1x1xf32>
    %10 = arith.divf %9, %8 : vector<2x1x1xf32>
    %cst_5 = arith.constant 1.000000e+00 : f32
    %11 = vector.broadcast %cst_5 : f32 to vector<2x1x1xf32>
    %12 = arith.select %6, %10, %11 : vector<2x1x1xi1>, vector<2x1x1xf32>
    %13 = vector.broadcast %12 : vector<2x1x1xf32> to vector<2x1x32xf32>
    %14 = arith.mulf %0, %13 : vector<2x1x32xf32>
    %c0_6 = arith.constant 0 : index
    %c0_7 = arith.constant 0 : index
    %c0_8 = arith.constant 0 : index
    %15 = vector.load %arg5[%c0_6, %c0_7, %c0_8] : memref<2x1x32xf32, #tpu.memory_space<vmem>>, vector<2x1x32xf32>
    tpu.vector_store %arg5[%c0_6, %c0_7, %c0_8], %14 {strides = array<i32>} : memref<2x1x32xf32, #tpu.memory_space<vmem>>, vector<2x1x32xf32>,
    %c0_9 = arith.constant 0 : index
    %c0_10 = arith.constant 0 : index
    %c0_11 = arith.constant 0 : index
    %16 = vector.load %arg2[%c0_9, %c0_10, %c0_11] : memref<2x8x32xf32, #tpu.memory_space<vmem>>, vector<2x8x32xf32>
    %c0_12 = arith.constant 0 : index
    %c0_13 = arith.constant 0 : index
    %c0_14 = arith.constant 0 : index
    %17 = vector.load %arg3[%c0_12, %c0_13, %c0_14] : memref<2x8x32xf32, #tpu.memory_space<vmem>>, vector<2x8x32xf32>
    %18 = vector.broadcast %14 : vector<2x1x32xf32> to vector<2x8x32xf32>
    %19 = arith.mulf %16, %18 : vector<2x8x32xf32>
    %cst_15 = arith.constant dense<0.000000e+00> : vector<2x8xf32>
    %20 = vector.multi_reduction <add>, %19, %cst_15 [2] : vector<2x8x32xf32> to vector<2x8xf32>
    %21 = vector.broadcast %14 : vector<2x1x32xf32> to vector<2x8x32xf32>
    %22 = arith.mulf %17, %21 : vector<2x8x32xf32>
    %cst_16 = arith.constant dense<0.000000e+00> : vector<2x8xf32>
    %23 = vector.multi_reduction <add>, %22, %cst_16 [2] : vector<2x8x32xf32> to vector<2x8xf32>
    %cst_17 = arith.constant 0.00999999977 : f32
    %24 = vector.broadcast %cst_17 : f32 to vector<2x8xf32>
    %25 = arith.addf %20, %24 : vector<2x8xf32>
    %cst_18 = arith.constant 0.000000e+00 : f32
    %26 = vector.broadcast %cst_18 : f32 to vector<2x8xf32>
    %27 = arith.minimumf %25, %26 : vector<2x8xf32>
    %28 = math.absf %25 : vector<2x8xf32>
    %cst_19 = arith.constant 0.000000e+00 : f32
    %29 = vector.broadcast %cst_19 : f32 to vector<2x8xf32>
    %30 = arith.subf %29, %28 : vector<2x8xf32>
    %31 = math.exp %30 : vector<2x8xf32>
    %cst_20 = arith.constant 1.000000e+00 : f32
    %32 = vector.broadcast %cst_20 : f32 to vector<2x8xf32>
    %33 = arith.addf %32, %31 : vector<2x8xf32>
    %34 = math.log %33 : vector<2x8xf32>
    %35 = arith.subf %27, %34 : vector<2x8xf32>
    %cst_21 = arith.constant 0.000000e+00 : f32
    %36 = vector.broadcast %cst_21 : f32 to vector<2x8xf32>
    %37 = arith.subf %36, %23 : vector<2x8xf32>
    %cst_22 = arith.constant 0.00999999977 : f32
    %38 = vector.broadcast %cst_22 : f32 to vector<2x8xf32>
    %39 = arith.addf %37, %38 : vector<2x8xf32>
    %cst_23 = arith.constant 0.000000e+00 : f32
    %40 = vector.broadcast %cst_23 : f32 to vector<2x8xf32>
    %41 = arith.minimumf %39, %40 : vector<2x8xf32>
    %42 = math.absf %39 : vector<2x8xf32>
    %cst_24 = arith.constant 0.000000e+00 : f32
    %43 = vector.broadcast %cst_24 : f32 to vector<2x8xf32>
    %44 = arith.subf %43, %42 : vector<2x8xf32>
    %45 = math.exp %44 : vector<2x8xf32>
    %cst_25 = arith.constant 1.000000e+00 : f32
    %46 = vector.broadcast %cst_25 : f32 to vector<2x8xf32>
    %47 = arith.addf %46, %45 : vector<2x8xf32>
    %48 = math.log %47 : vector<2x8xf32>
    %49 = arith.subf %41, %48 : vector<2x8xf32>
    %c2_i32 = arith.constant 2 : i32
    %50 = arith.muli %arg0, %c2_i32 : i32
    %51 = tpu.iota {dimensions = array<i32: 0>} : vector<2x8xi32>
    %52 = vector.broadcast %50 : i32 to vector<2x8xi32>
    %53 = arith.addi %52, %51 : vector<2x8xi32>
    %c2_i32_26 = arith.constant 2 : i32
    %54 = arith.muli %arg0, %c2_i32_26 : i32
    %55 = tpu.iota {dimensions = array<i32: 0>} : vector<2x8xi32>
    %56 = vector.broadcast %54 : i32 to vector<2x8xi32>
    %57 = arith.addi %56, %55 : vector<2x8xi32>
    %c2_i32_27 = arith.constant 2 : i32
    %58 = vector.broadcast %c2_i32_27 : i32 to vector<2x8xi32>
    %59 = arith.cmpi slt, %53, %58 : vector<2x8xi32>
    %cst_28 = arith.constant 0.000000e+00 : f32
    %60 = vector.broadcast %cst_28 : f32 to vector<2x8xf32>
    %61 = arith.select %59, %35, %60 : vector<2x8xi1>, vector<2x8xf32>
    %c2_i32_29 = arith.constant 2 : i32
    %62 = vector.broadcast %c2_i32_29 : i32 to vector<2x8xi32>
    %63 = arith.cmpi slt, %57, %62 : vector<2x8xi32>
    %cst_30 = arith.constant 0.000000e+00 : f32
    %64 = vector.broadcast %cst_30 : f32 to vector<2x8xf32>
    %65 = arith.select %63, %49, %64 : vector<2x8xi1>, vector<2x8xf32>
    %66 = vector.shape_cast %61 : vector<2x8xf32> to vector<1x2x8xf32>
    %cst_31 = arith.constant dense<0.000000e+00> : vector<1xf32>
    %67 = vector.multi_reduction <add>, %66, %cst_31 [1, 2] : vector<1x2x8xf32> to vector<1xf32>
    %68 = vector.shape_cast %67 : vector<1xf32> to vector<1x1x1xf32>
    %69 = vector.extract %68[0, 0, 0] : f32 from vector<1x1x1xf32>
    %70 = vector.shape_cast %65 : vector<2x8xf32> to vector<1x2x8xf32>
    %cst_32 = arith.constant dense<0.000000e+00> : vector<1xf32>
    %71 = vector.multi_reduction <add>, %70, %cst_32 [1, 2] : vector<1x2x8xf32> to vector<1xf32>
    %72 = vector.shape_cast %71 : vector<1xf32> to vector<1x1x1xf32>
    %73 = vector.extract %72[0, 0, 0] : f32 from vector<1x1x1xf32>
    %74 = arith.addf %69, %73 : f32
    %cst_33 = arith.constant 0.000000e+00 : f32
    %75 = arith.subf %cst_33, %74 : f32
    %76 = vector.broadcast %75 : f32 to vector<1x1x1xf32>
    %c0_34 = arith.constant 0 : index
    %c0_35 = arith.constant 0 : index
    %c0_36 = arith.constant 0 : index
    %77 = vector.load %arg4[%c0_34, %c0_35, %c0_36] : memref<1x1x1xf32, #tpu.memory_space<vmem>>, vector<1x1x1xf32>
    tpu.vector_store %arg4[%c0_34, %c0_35, %c0_36], %76 {strides = array<i32>} : memref<1x1x1xf32, #tpu.memory_space<vmem>>, vector<1x1x1xf32>,
    return
  }
  func.func @transform_0(%arg0: i32) -> (i32, i32, i32) {
    %c0_i32 = arith.constant 0 : i32
    %c0_i32_0 = arith.constant 0 : i32
    %c0_i32_1 = arith.constant 0 : i32
    return %arg0, %c0_i32, %c0_i32_0 : i32, i32, i32
  }
  func.func @transform_1(%arg0: i32) -> (i32, i32, i32) {
    %c0_i32 = arith.constant 0 : i32
    %c0_i32_0 = arith.constant 0 : i32
    %c0_i32_1 = arith.constant 0 : i32
    return %arg0, %c0_i32, %c0_i32_0 : i32, i32, i32
  }
  func.func @transform_2(%arg0: i32) -> (i32, i32, i32) {
    %c0_i32 = arith.constant 0 : i32
    %c0_i32_0 = arith.constant 0 : i32
    %c0_i32_1 = arith.constant 0 : i32
    return %arg0, %c0_i32, %c0_i32_0 : i32, i32, i32
  }
  func.func @transform_3(%arg0: i32) -> (i32, i32, i32) {
    %c0_i32 = arith.constant 0 : i32
    %c0_i32_0 = arith.constant 0 : i32
    %c0_i32_1 = arith.constant 0 : i32
    return %arg0, %c0_i32, %c0_i32_0 : i32, i32, i32
  }
  func.func @transform_4(%arg0: i32) -> (i32, i32, i32) {
    %c0_i32 = arith.constant 0 : i32
    %c0_i32_0 = arith.constant 0 : i32
    %c0_i32_1 = arith.constant 0 : i32
    return %arg0, %c0_i32, %c0_i32_0 : i32, i32, i32
  }
}

</mosaic_0001>

<llo_original>
// kernel: tpu_custom_call.1
$region0: #{tpu_custom_call.1}
  #allocation0 [shape = 'u32[]', space=smem, size = 0x4, offset = 0x4, fixed_abs, tag = 'smem constant byte address 0x4 - core index']
  #allocation1 [shape = 'u32[144,128]{1,0:T(1,128)}', space=vmem, size = 0x12000, scoped, tag = 'internal scratch']
  %s0 = inlined_call_operand.hbm [shape: f32[2,1,32], index: 0, kind: input, shape index: {}]
  %s1 = inlined_call_operand.hbm [shape: f32[2,8,32], index: 1, kind: input, shape index: {}]
  %s2 = inlined_call_operand.hbm [shape: f32[2,8,32], index: 2, kind: input, shape index: {}]
  %s3 = inlined_call_operand.hbm [shape: f32[1,1,1], index: 3, kind: output, shape index: {0}]
  %s4 = inlined_call_operand.hbm [shape: f32[2,1,32], index: 4, kind: output, shape index: {1}]
  %5 = xla_tuple %s3, %s4
  %s6 = sld [smem:[#allocation0]]
  $region42: #{tpu_custom_call.1} parent=0
    _
  %s8 = ssub.s32 1, %s6
  %s9 = scalar_select 0, %s8, %s6
  $region1: #{tpu_custom_call.1} parent=0
    #allocation2 [shape = 'u8[1024]{0}', space=vmem, size = 0x400, scoped, tag = 'input window, operand 0, single buffered']
    #allocation3 [shape = 's32[1]{0}', space=sflag, size = 0x4, scoped, tag = 'scoped memory for tpu_custom_call.1']
    #allocation4 [shape = 's32[1]{0}', space=sflag, size = 0x4, scoped, tag = 'scoped memory for tpu_custom_call.1']
    #allocation5 [shape = 'u8[8192]{0}', space=vmem, size = 0x2000, scoped, tag = 'input window, operand 1, single buffered']
    #allocation6 [shape = 's32[1]{0}', space=sflag, size = 0x4, scoped, tag = 'scoped memory for tpu_custom_call.1']
    #allocation7 [shape = 'u8[8192]{0}', space=vmem, size = 0x2000, scoped, tag = 'input window, operand 2, single buffered']
    #allocation8 [shape = 'u8[512]{0}', space=vmem, size = 0x400, scoped, tag = 'output window, operand 0, single buffered']
    #allocation9 [shape = 'u8[1024]{0}', space=vmem, size = 0x400, scoped, tag = 'output window, operand 1, single buffered']
    #allocation10 [shape = 's32[1]{0}', space=sflag, size = 0x4, scoped, tag = 'scoped memory for tpu_custom_call.1']
    %10 = vsyncpa [#allocation3], 0
    %11 = vsyncpa [#allocation6], 0
    %12 = vsyncpa [#allocation4], 0
    %13 = vsyncpa [#allocation10], 0
    // Predicated region
    $region2: #{tpu_custom_call.1} parent=1 // pred_check
      _
    $region3: #{tpu_custom_call.1} parent=1 // pred_check_branch
      %15 = sbr.rel (0) target = $region5
    $region4: #{tpu_custom_call.1} parent=1 // pred_region
      %s17 = ssub.s32 32, 32
      %18 = vsyncadd [#allocation3], %s17
      %s19 = sshll.u32 [#allocation2], 4
      %s20 = int_to_ptr.vmem [resolvable:$true] %s19
      %25 = dma.hbm_to_vmem [thread:$0]  %s0, 32, %s20, [#allocation3], 16, 16, 1
    $region5: #{tpu_custom_call.1} parent=1 // pred_fallthru
      _
    // Predicated region
    $region6: #{tpu_custom_call.1} parent=1 // pred_check
      _
    $region7: #{tpu_custom_call.1} parent=1 // pred_check_branch
      %27 = sbr.rel (0) target = $region9
    $region8: #{tpu_custom_call.1} parent=1 // pred_region
      %s29 = ssub.s32 256, 256
      %30 = vsyncadd [#allocation6], %s29
      %s31 = sshll.u32 [#allocation5], 4
      %s32 = int_to_ptr.vmem [resolvable:$true] %s31
      %37 = dma.hbm_to_vmem [thread:$0]  %s1, 256, %s32, [#allocation6], 128, 128, 8
    $region9: #{tpu_custom_call.1} parent=1 // pred_fallthru
      _
    // Predicated region
    $region10: #{tpu_custom_call.1} parent=1 // pred_check
      _
    $region11: #{tpu_custom_call.1} parent=1 // pred_check_branch
      %39 = sbr.rel (0) target = $region13
    $region12: #{tpu_custom_call.1} parent=1 // pred_region
      %s41 = ssub.s32 256, 256
      %42 = vsyncadd [#allocation6], %s41
      %s43 = sshll.u32 [#allocation7], 4
      %s44 = int_to_ptr.vmem [resolvable:$true] %s43
      %49 = dma.hbm_to_vmem [thread:$0]  %s2, 256, %s44, [#allocation6], 128, 128, 8
    $region13: #{tpu_custom_call.1} parent=1 // pred_fallthru
      _
    // Predicated region
    $region14: #{tpu_custom_call.1} parent=1 // pred_check
      _
    $region15: #{tpu_custom_call.1} parent=1 // pred_check_branch
      %51 = sbr.rel (0) target = $region17
    $region16: #{tpu_custom_call.1} parent=1 // pred_region
      %52 = dma.done [#allocation3], 32
    $region17: #{tpu_custom_call.1} parent=1 // pred_fallthru
      _
    // Predicated region
    $region18: #{tpu_custom_call.1} parent=1 // pred_check
      _
    $region19: #{tpu_custom_call.1} parent=1 // pred_check_branch
      %54 = sbr.rel (0) target = $region21
    $region20: #{tpu_custom_call.1} parent=1 // pred_region
      %55 = dma.done [#allocation6], 256
    $region21: #{tpu_custom_call.1} parent=1 // pred_fallthru
      _
    // Predicated region
    $region22: #{tpu_custom_call.1} parent=1 // pred_check
      _
    $region23: #{tpu_custom_call.1} parent=1 // pred_check_branch
      %57 = sbr.rel (0) target = $region25
    $region24: #{tpu_custom_call.1} parent=1 // pred_region
      %58 = dma.done [#allocation6], 256
    $region25: #{tpu_custom_call.1} parent=1 // pred_fallthru
      _
    %v59 = vld [vmem:[#allocation2] sm:$0x1]
    %v60 = vld [vmem:[#allocation2 + $0x1] sm:$0x1]
    %v61 = vmul.f32 %v59, %v59
    %v62 = vmul.f32 %v60, %v60
    %vm63 = vcmask 253952
    %v64 = vsel %vm63, %v61, 0.0
    %65 = vadd.xlane.f32.xlu0 %v64
    %v66 = vpop.xlane.xlu0 %65
    %v67 = vsel %vm63, %v62, 0.0
    %68 = vadd.xlane.f32.xlu0 %v67
    %v69 = vpop.xlane.xlu0 %68
    %v70 = vrsqrt.pop %v66
    %v71 = vmul.f32 %v66, %v70
    %vm72 = vcmp.eq.f32.partialorder %v66, inf
    %v73 = vsel %vm72, %v66, %v71
    %vm74 = vcmp.eq.f32.partialorder %v66, 0.0
    %v75 = vand.u32 %v66, 2147483648
    %v76 = vsel %vm74, %v75, %v73
    %v77 = vrsqrt.pop %v69
    %v78 = vmul.f32 %v69, %v77
    %vm79 = vcmp.eq.f32.partialorder %v69, inf
    %v80 = vsel %vm79, %v69, %v78
    %vm81 = vcmp.eq.f32.partialorder %v69, 0.0
    %v82 = vand.u32 %v69, 2147483648
    %v83 = vsel %vm81, %v82, %v80
    %vm84 = vcmp.gt.f32.partialorder %v76, 1.0
    %vm85 = vcmp.gt.f32.partialorder %v83, 1.0
    %v86 = vadd.f32 %v76, 1e-07
    %v87 = vadd.f32 %v83, 1e-07
    %v88 = vrcp.pop %v86
    %v89 = vmul.f32 1.0, %v88
    %v90 = vrcp.pop %v87
    %v91 = vmul.f32 1.0, %v90
    %v92 = vsel %vm84, %v89, 1.0
    %v93 = vsel %vm85, %v91, 1.0
    %v94 = vmul.f32 %v59, %v92
    %v95 = vmul.f32 %v60, %v93
    %96 = vst.msk [vmem:[#allocation9] sm:$0x1] %vm63, %v94
    %97 = vst.msk [vmem:[#allocation9 + $0x1] sm:$0x1] %vm63, %v95
    %v98 = vld [vmem:[#allocation5] sm:$0xff]
    %v99 = vld [vmem:[#allocation5 + $0x8] sm:$0xff]
    %v100 = vld [vmem:[#allocation7] sm:$0xff]
    %v101 = vld [vmem:[#allocation7 + $0x8] sm:$0xff]
    %v104 = vlaneseq
    %v105 = vshrl.u32 %v104, 7
    %v106 = vsub.s32 0, %v105
    %v107 = vrot.slane %v94, %v106
    %v108 = vlaneseq
    %v109 = vshrl.u32 %v108, 7
    %v110 = vsub.s32 0, %v109
    %v111 = vrot.slane %v95, %v110
    %v114 = vmul.f32 %v98, %v107
    %v115 = vmul.f32 %v99, %v111
    %vm116 = vcmask 261120
    %v117 = vsel %vm116, %v114, 0.0
    %118 = vadd.xlane.f32.xlu0 %v117
    %v119 = vpop.xlane.xlu0 %118
    %v120 = vsel %vm116, %v115, 0.0
    %121 = vadd.xlane.f32.xlu0 %v120
    %v122 = vpop.xlane.xlu0 %121
    %v123 = vmul.f32 %v100, %v107
    %v124 = vmul.f32 %v101, %v111
    %v125 = vsel %vm116, %v123, 0.0
    %126 = vadd.xlane.f32.xlu0 %v125
    %v127 = vpop.xlane.xlu0 %126
    %v128 = vsel %vm116, %v124, 0.0
    %129 = vadd.xlane.f32.xlu0 %v128
    %v130 = vpop.xlane.xlu0 %129
    %v131 = vadd.f32 %v119, 0.01
    %v132 = vadd.f32 %v122, 0.01
    %v133 = vmin.f32 %v131, 0.0
    %v134 = vmin.f32 %v132, 0.0
    %v135 = vand.u32 2147483647, %v131
    %v136 = vand.u32 2147483647, %v132
    %v137 = vsub.f32 0.0, %v135
    %v138 = vsub.f32 0.0, %v136
    %v139 = vmul.f32 %v137, 1.442695
    %v140 = vpow.pop %v139
    %v141 = vmul.f32 %v138, 1.442695
    %v142 = vpow.pop %v141
    %v143 = vadd.f32 %v140, 1.0
    %v144 = vadd.f32 %v142, 1.0
    %v145 = vlog2.pop %v143
    %v146 = vmul.f32 %v145, 0.6931472
    %v147 = vlog2.pop %v144
    %v148 = vmul.f32 %v147, 0.6931472
    %v149 = vsub.f32 %v133, %v146
    %v150 = vsub.f32 %v134, %v148
    %v151 = vsub.f32 0.0, %v127
    %v152 = vsub.f32 0.0, %v130
    %v153 = vadd.f32 %v151, 0.01
    %v154 = vadd.f32 %v152, 0.01
    %v155 = vmin.f32 %v153, 0.0
    %v156 = vmin.f32 %v154, 0.0
    %v157 = vand.u32 2147483647, %v153
    %v158 = vand.u32 2147483647, %v154
    %v159 = vsub.f32 0.0, %v157
    %v160 = vsub.f32 0.0, %v158
    %v161 = vmul.f32 %v159, 1.442695
    %v162 = vpow.pop %v161
    %v163 = vmul.f32 %v160, 1.442695
    %v164 = vpow.pop %v163
    %v165 = vadd.f32 %v162, 1.0
    %v166 = vadd.f32 %v164, 1.0
    %v167 = vlog2.pop %v165
    %v168 = vmul.f32 %v167, 0.6931472
    %v169 = vlog2.pop %v166
    %v170 = vmul.f32 %v169, 0.6931472
    %v171 = vsub.f32 %v155, %v168
    %v172 = vsub.f32 %v156, %v170
    %s173 = smul.u32 0, 2
    %v174 = vlaneseq
    %v175 = vshrl.u32 %v174, 7
    %v176 = vstv %s173
    %v177 = vadd.s32 %v176, %v175
    %vm178 = vcmp.lt.s32.totalorder %v177, 2
    %v181 = vlaneseq
    %v182 = vand.u32 %v181, 127
    %v183 = vlaneseq
    %v184 = vshrl.u32 %v183, 7
    %v185 = vsub.s32 %v182, %v184
    %v186 = vrot.slane %v149, %v185
    %v187 = vlaneseq
    %v188 = vshrl.u32 %v187, 7
    %v189 = vsub.s32 %v182, %v188
    %v190 = vrot.slane %v150, %v189
    %vm191 = vcmask 1041409
    %v192 = vsel %vm191, %v190, %v186
    %v194 = vsel %vm178, %v192, 0.0
    %v197 = vlaneseq
    %v198 = vshrl.u32 %v197, 7
    %v199 = vsub.s32 %v182, %v198
    %v200 = vrot.slane %v171, %v199
    %v201 = vlaneseq
    %v202 = vshrl.u32 %v201, 7
    %v203 = vsub.s32 %v182, %v202
    %v204 = vrot.slane %v172, %v203
    %v205 = vsel %vm191, %v204, %v200
    %v207 = vsel %vm178, %v205, 0.0
    %vm208 = vcmask 58368
    %v209 = vsel %vm208, %v194, 0.0
    %210 = vadd.xlane.f32.xlu0 %v209
    %v211 = vpop.xlane.xlu0 %210
    %v212 = vrot.slane %v211, 4
    %v213 = vadd.f32 %v211, %v212
    %v214 = vrot.slane %v213, 2
    %v215 = vadd.f32 %v213, %v214
    %v216 = vrot.slane %v215, 1
    %v217 = vadd.f32 %v215, %v216
    %s218 = vtos %v217
    %v219 = vsel %vm208, %v207, 0.0
    %220 = vadd.xlane.f32.xlu0 %v219
    %v221 = vpop.xlane.xlu0 %220
    %v222 = vrot.slane %v221, 4
    %v223 = vadd.f32 %v221, %v222
    %v224 = vrot.slane %v223, 2
    %v225 = vadd.f32 %v223, %v224
    %v226 = vrot.slane %v225, 1
    %v227 = vadd.f32 %v225, %v226
    %s228 = vtos %v227
    %s229 = sadd.f32 %s218, %s228
    %s230 = ssub.f32 0.0, %s229
    %v231 = vstv %s230
    %vm232 = vcmask 0
    %233 = vst.msk [vmem:[#allocation8] sm:$0x1] %vm232, %v231
    // Predicated region
    $region26: #{tpu_custom_call.1} parent=1 // pred_check
      _
    $region27: #{tpu_custom_call.1} parent=1 // pred_check_branch
      %235 = sbr.rel (0) target = $region29
    $region28: #{tpu_custom_call.1} parent=1 // pred_region
      %s237 = ssub.s32 16, 16
      %238 = vsyncadd [#allocation4], %s237
      %s240 = sshll.u32 [#allocation8], 4
      %s241 = int_to_ptr.vmem [resolvable:$true] %s240
      %243 = dma.vmem_to_hbm [thread:$0]  %s241, 16, %s3, [#allocation4]
    $region29: #{tpu_custom_call.1} parent=1 // pred_fallthru
      _
    // Predicated region
    $region30: #{tpu_custom_call.1} parent=1 // pred_check
      _
    $region31: #{tpu_custom_call.1} parent=1 // pred_check_branch
      %245 = sbr.rel (0) target = $region33
    $region32: #{tpu_custom_call.1} parent=1 // pred_region
      %s247 = ssub.s32 32, 32
      %248 = vsyncadd [#allocation10], %s247
      %s249 = sshll.u32 [#allocation9], 4
      %s250 = int_to_ptr.vmem [resolvable:$true] %s249
      %255 = dma.vmem_to_hbm [thread:$0]  %s250, 32, %s4, [#allocation10], 16, 16, 1
    $region33: #{tpu_custom_call.1} parent=1 // pred_fallthru
      _
    // Predicated region
    $region34: #{tpu_custom_call.1} parent=1 // pred_check
      _
    $region35: #{tpu_custom_call.1} parent=1 // pred_check_branch
      %257 = sbr.rel (0) target = $region37
    $region36: #{tpu_custom_call.1} parent=1 // pred_region
      %258 = dma.done [#allocation4], 16
    $region37: #{tpu_custom_call.1} parent=1 // pred_fallthru
      _
    // Predicated region
    $region38: #{tpu_custom_call.1} parent=1 // pred_check
      _
    $region39: #{tpu_custom_call.1} parent=1 // pred_check_branch
      %260 = sbr.rel (0) target = $region41
    $region40: #{tpu_custom_call.1} parent=1 // pred_region
      %261 = dma.done [#allocation10], 32
    $region41: #{tpu_custom_call.1} parent=1 // pred_fallthru
      _
    %262 = vsyncpa [#allocation3], 1
    %263 = vsyncpa [#allocation6], 1
    %264 = vsyncpa [#allocation4], 1
    %265 = vsyncpa [#allocation10], 1

</llo_original>
